<compile_context>
chip_gen: v5e
topology: v5e:2x2
jax: 0.10.0
libtpu: 0.0.40
codegen_flags: <defaults>
</compile_context>

<pallas_src>
from functools import partial

import jax
import jax.numpy as jnp
from jax import lax
from jax.experimental import pallas as pl
from jax.experimental.pallas import tpu as pltpu

_LANE = 128
_SUBLANE = 8
_EPS_N2 = 1e-24   # eps on the *squared* norm == F.normalize's 1e-12 on the norm


def _round_up(x, m):
    return ((x + m - 1) // m) * m


def _tiling(n):
    """(n_pad, tm, tk) for streaming the [N, N] adjacency.

    Small graphs (N <= 1024): a single tile (block dims == full array dims are
    always legal).
    Large graphs: 512-row x 1024-col bf16 adjacency tiles (1 MiB each) so the
    ~0.35 us per-grid-step overhead is amortised (~70%+ of HBM roofline), while
    double-buffered inputs + the f32 accumulator + output stay far below the
    32 MiB scoped-VMEM default on every chip generation.
    """
    if n <= 1024:
        n_pad = _round_up(n, _SUBLANE)
        return n_pad, n_pad, n_pad
    n_pad = _round_up(n, 1024)
    return n_pad, 512, 1024


# -----------------------------------------------------------------------------
# Kernel A: row-tiled linear  (+ optional input L2 row-norm, + optional
#           per-head L2 row-norm before propagation).  Output bf16, lane-dense.
# -----------------------------------------------------------------------------
def _linear_kernel(x_ref, wt_ref, b_ref, o_ref, *,
                   norm_input, norm_pre_prop, seg0, seg1, scaling):
    x = x_ref[...].astype(jnp.float32)                       # [tm, Din]

    if norm_input:
        # F.normalize(x, p=2, dim=1) * scaling  via one rsqrt (EUP) + one mul
        n2 = jnp.sum(x * x, axis=1, keepdims=True)
        x = x * (lax.rsqrt(jnp.maximum(n2, _EPS_N2)) * scaling)

    # Linear (MXU, f32 accumulation). Padded weight/bias columns are zero.
    h = jnp.dot(x, wt_ref[...], preferred_element_type=jnp.float32) + b_ref[...]

    if norm_pre_prop:
        h2 = h * h
        if seg1 > 0:
            # Fused mu/var heads: normalise each head's columns independently.
            col = lax.broadcasted_iota(jnp.int32, h.shape, 1)
            m0 = (col < seg0).astype(jnp.float32)
            m1 = ((col >= seg0) & (col < seg0 + seg1)).astype(jnp.float32)
            inv0 = lax.rsqrt(jnp.maximum(
                jnp.sum(h2 * m0, axis=1, keepdims=True), _EPS_N2))
            inv1 = lax.rsqrt(jnp.maximum(
                jnp.sum(h2 * m1, axis=1, keepdims=True), _EPS_N2))
            h = h * ((inv0 * m0 + inv1 * m1) * scaling)
        else:
            inv = lax.rsqrt(jnp.maximum(
                jnp.sum(h2, axis=1, keepdims=True), _EPS_N2))
            h = h * (inv * scaling)

    o_ref[...] = h.astype(o_ref.dtype)


def linear_norm(x, wt_pad, b_pad, *, norm_input, norm_pre_prop, seg0, seg1,
                scaling, tm):
    """x:[N_pad, Din], wt_pad:[Din, Dout_pad], b_pad:[1, Dout_pad] -> bf16 [N_pad, Dout_pad]."""
    n_pad, din = x.shape
    dout_pad = wt_pad.shape[1]
    kern = partial(_linear_kernel, norm_input=norm_input,
                   norm_pre_prop=norm_pre_prop, seg0=seg0, seg1=seg1,
                   scaling=scaling)
    return pl.pallas_call(
        kern,
        out_shape=jax.ShapeDtypeStruct((n_pad, dout_pad), jnp.bfloat16),
        grid=(n_pad // tm,),
        in_specs=[
            pl.BlockSpec((tm, din), lambda i: (i, 0)),        # x rows
            pl.BlockSpec((din, dout_pad), lambda i: (0, 0)),  # W^T (resident)
            pl.BlockSpec((1, dout_pad), lambda i: (0, 0)),    # bias (resident)
        ],
        out_specs=pl.BlockSpec((tm, dout_pad), lambda i: (i, 0)),
        compiler_params=pltpu.CompilerParams(
            dimension_semantics=("parallel",)),
    )(x, wt_pad, b_pad)


# -----------------------------------------------------------------------------
# Kernel B: tiled propagate   out = act(A_hat @ h)
#   grid = (row tiles, k reduction tiles); f32 VMEM accumulator; pl.when
#   init/finalize on the reduction axis; row axis is "parallel" (megacore).
# -----------------------------------------------------------------------------
def _propagate_kernel(adj_ref, h_ref, o_ref, acc_ref, *, act, slope):
    k = pl.program_id(1)

    @pl.when(k == 0)
    def _():
        acc_ref[...] = jnp.zeros_like(acc_ref)

    acc_ref[...] += jnp.dot(adj_ref[...], h_ref[...],
                            preferred_element_type=jnp.float32)

    @pl.when(k == pl.num_programs(1) - 1)
    def _():
        a = acc_ref[...]
        if act == 'relu':
            a = jnp.maximum(a, 0.0)
        elif act == 'lrelu':
            a = jnp.where(a > 0, a, slope * a)
        elif act == 'sigmoid':
            a = jax.nn.sigmoid(a)
        elif act == 'xtanh':
            a = jnp.tanh(a) + slope * a
        # act == 'none': identity
        o_ref[...] = a.astype(o_ref.dtype)


def propagate(adj_bf16, h_bf16, *, act, slope, tm, tk, out_dtype=jnp.float32):
    """adj:[N_pad,N_pad] bf16, h:[N_pad,Dout_pad] bf16 -> act(adj @ h) [N_pad,Dout_pad]."""
    n_pad = adj_bf16.shape[0]
    dout_pad = h_bf16.shape[1]
    kern = partial(_propagate_kernel, act=act, slope=slope)
    return pl.pallas_call(
        kern,
        out_shape=jax.ShapeDtypeStruct((n_pad, dout_pad), out_dtype),
        grid=(n_pad // tm, n_pad // tk),
        in_specs=[
            pl.BlockSpec((tm, tk), lambda i, k: (i, k)),        # A_hat tile
            pl.BlockSpec((tk, dout_pad), lambda i, k: (k, 0)),  # h rows
        ],
        out_specs=pl.BlockSpec((tm, dout_pad), lambda i, k: (i, 0)),
        scratch_shapes=[pltpu.VMEM((tm, dout_pad), jnp.float32)],
        compiler_params=pltpu.CompilerParams(
            dimension_semantics=("parallel", "arbitrary")),
    )(adj_bf16, h_bf16)


# -----------------------------------------------------------------------------
# Glue: dense GCN-normalised adjacency (PyG gcn_norm semantics, unit weights)
# -----------------------------------------------------------------------------
def build_gcn_adj(edge_index, num_nodes):
    src = edge_index[0]
    dst = edge_index[1]
    A = jnp.zeros((num_nodes, num_nodes), jnp.float32)
    A = A.at[dst, src].add(1.0)                # keep edge multiplicity
    eye = jnp.eye(num_nodes, dtype=jnp.float32)
    A = A * (1.0 - eye) + eye                  # add_remaining_self_loops (w=1)
    deg = jnp.sum(A, axis=1)
    dinv = jnp.where(deg > 0, lax.rsqrt(jnp.maximum(deg, 1e-12)), 0.0)
    return A * dinv[:, None] * dinv[None, :]   # D^-1/2 (A+I) D^-1/2


def _pad_linear(w, b, dout_pad, din_pad):
    """w:[Dout,Din] (torch layout), b:[Dout] -> (W^T padded [din_pad,dout_pad], bias [1,dout_pad])."""
    dout, din = w.shape
    wt = w.T.astype(jnp.float32)
    wt = jnp.pad(wt, ((0, din_pad - din), (0, dout_pad - dout)))
    b2 = jnp.pad(b.astype(jnp.float32), (0, dout_pad - dout)).reshape(1, dout_pad)
    return wt, b2


# -----------------------------------------------------------------------------
# VGCNEncoder forward (eval mode)
# -----------------------------------------------------------------------------
def vgcn_encoder_forward(x, edge_index, params, *, n_layers, activation,
                         scaling=1.0, normalize=True, slope=0.1):
    """params: list of (W, b); len == n_layers + 1 (last two are the mu / var heads)."""
    N, Din = x.shape
    n_pad, tm, tk = _tiling(N)

    # Dense normalised adjacency, zero-padded to the tile grid, streamed as bf16.
    adj = build_gcn_adj(edge_index, N)
    adj = jnp.pad(adj, ((0, n_pad - N), (0, n_pad - N))).astype(jnp.bfloat16)

    h = jnp.pad(x.astype(jnp.float32), ((0, n_pad - N), (0, 0)))

    # Hidden layers: [input-norm on layer 0] -> linear -> propagate -> act
    for c in range(n_layers - 1):
        w, b = params[c]
        dout = w.shape[0]
        dout_pad = _round_up(dout, _LANE)
        wt_pad, b_pad = _pad_linear(w, b, dout_pad, din_pad=h.shape[1])
        h_lin = linear_norm(h, wt_pad, b_pad,
                            norm_input=(normalize and c == 0),
                            norm_pre_prop=False, seg0=dout, seg1=0,
                            scaling=scaling, tm=tm)
        # Hidden activations written back as bf16: halves intermediate HBM
        # traffic; the next linear re-promotes to f32.
        h = propagate(adj, h_lin, act=activation[c], slope=slope, tm=tm, tk=tk,
                      out_dtype=jnp.bfloat16)

    # Fused mu / var heads: one linear + one propagate over concatenated weights.
    w_mu, b_mu = params[n_layers - 1]
    w_var, b_var = params[n_layers]
    dout = w_mu.shape[0]
    w_cat = jnp.concatenate([w_mu, w_var], axis=0)           # [2*Dout, Din_head]
    b_cat = jnp.concatenate([b_mu, b_var], axis=0)
    dcat_pad = _round_up(2 * dout, _LANE)
    wt_pad, b_pad = _pad_linear(w_cat, b_cat, dcat_pad, din_pad=h.shape[1])
    h_lin = linear_norm(h, wt_pad, b_pad,
                        norm_input=(normalize and n_layers == 1),
                        norm_pre_prop=normalize, seg0=dout, seg1=dout,
                        scaling=scaling, tm=tm)
    out = propagate(adj, h_lin, act='none', slope=slope, tm=tm, tk=tk,
                    out_dtype=jnp.float32)

    mu = out[:N, :dout]
    var = out[:N, dout:2 * dout]
    return mu, var


# -----------------------------------------------------------------------------
# Pure-JAX reference (same math, f32) for a sanity check
# -----------------------------------------------------------------------------
def _reference_forward(x, adj, params, *, n_layers, activation, scaling,
                       normalize, slope=0.1):
    def rownorm(v):
        n = jnp.sqrt(jnp.sum(v * v, axis=1, keepdims=True))
        return v / jnp.maximum(n, 1e-12) * scaling

    acts = {'relu': lambda t: jnp.maximum(t, 0.0),
            'lrelu': lambda t: jnp.where(t > 0, t, slope * t),
            'sigmoid': jax.nn.sigmoid,
            'xtanh': lambda t: jnp.tanh(t) + slope * t,
            'none': lambda t: t}

    h = x
    if normalize:
        h = rownorm(h)
    for c in range(n_layers - 1):
        w, b = params[c]
        h = acts[activation[c]](adj @ (h @ w.T + b))
    w_mu, b_mu = params[n_layers - 1]
    w_var, b_var = params[n_layers]
    mu = h @ w_mu.T + b_mu
    var = h @ w_var.T + b_var
    if normalize:
        mu, var = rownorm(mu), rownorm(var)
    return adj @ mu, adj @ var


# -----------------------------------------------------------------------------
# Deterministic parameter init (torch.nn.Linear-style uniform bounds)
# -----------------------------------------------------------------------------
def init_linear(key, in_dim, out_dim):
    kw, kb = jax.random.split(key)
    bound = 1.0 / jnp.sqrt(in_dim)
    w = jax.random.uniform(kw, (out_dim, in_dim), jnp.float32, -bound, bound)
    b = jax.random.uniform(kb, (out_dim,), jnp.float32, -bound, bound)
    return w, b


if __name__ == "__main__":
    # Small shapes consistent with the module:
    #   N=8 nodes, input_dim=16, hidden_dim=32, output_dim=8
    N, input_dim, hidden_dim, output_dim = 8, 16, 32, 8
    scaling = 1.8

    key = jax.random.PRNGKey(0)
    kx, k0, k1, k2 = jax.random.split(key, 4)

    x = jax.random.normal(kx, (N, input_dim), jnp.float32)

    # Undirected ring graph as edge_index [2, E]
    fwd = jnp.stack([jnp.arange(N), (jnp.arange(N) + 1) % N], axis=0)
    edge_index = jnp.concatenate([fwd, fwd[::-1]], axis=1).astype(jnp.int32)

    adj_ref = build_gcn_adj(edge_index, N)

    # ---------------- Test 1: n_layers=2 (hidden layer + fused heads) --------
    n_layers = 2
    activation = ['relu'] * (n_layers - 1)
    params2 = [
        init_linear(k0, input_dim, hidden_dim),
        init_linear(k1, hidden_dim, output_dim),
        init_linear(k2, hidden_dim, output_dim),
    ]
    mu, var = vgcn_encoder_forward(x, edge_index, params2,
                                   n_layers=n_layers, activation=activation,
                                   scaling=scaling, normalize=True)
    jax.block_until_ready((mu, var))
    assert mu.shape == (N, output_dim) and var.shape == (N, output_dim)

    mu_ref, var_ref = _reference_forward(x, adj_ref, params2,
                                         n_layers=n_layers,
                                         activation=activation,
                                         scaling=scaling, normalize=True)
    # Kernels stream A_hat / activations in bf16, so use a loose tolerance.
    assert jnp.allclose(mu, mu_ref, rtol=5e-2, atol=5e-2)
    assert jnp.allclose(var, var_ref, rtol=5e-2, atol=5e-2)

    # ---------------- Test 2: n_layers=1 (heads only, input norm in head) ----
    params1 = [
        init_linear(k1, input_dim, output_dim),
        init_linear(k2, input_dim, output_dim),
    ]
    mu1, var1 = vgcn_encoder_forward(x, edge_index, params1,
                                     n_layers=1, activation=[],
                                     scaling=scaling, normalize=True)
    jax.block_until_ready((mu1, var1))
    mu1_ref, var1_ref = _reference_forward(x, adj_ref, params1,
                                           n_layers=1, activation=[],
                                           scaling=scaling, normalize=True)
    assert jnp.allclose(mu1, mu1_ref, rtol=5e-2, atol=5e-2)
    assert jnp.allclose(var1, var1_ref, rtol=5e-2, atol=5e-2)

    print("KERNEL_OK")
</pallas_src>

<mosaic_0001>
module attributes {stable_mosaic.version = 11 : i64} {
  func.func @_linear_kernel(%arg0: i32, %arg1: memref<8x16xf32, #tpu.memory_space<vmem>>, %arg2: memref<16x128xf32, #tpu.memory_space<vmem>>, %arg3: memref<1x128xf32, #tpu.memory_space<vmem>>, %arg4: memref<8x128xbf16, #tpu.memory_space<vmem>>) attributes {dimension_semantics = [#tpu.dimension_semantics<parallel>], iteration_bounds = array<i64: 1>, scalar_prefetch = 0 : i64, scratch_operands = 0 : i64, tpu.core_type = #tpu.core_type<tc>, window_params = [{transform_indices = @transform_0, window_bounds = array<i64: 8, 16>}, {pipeline_mode = #tpu.pipeline_mode<synchronous>, transform_indices = @transform_1, window_bounds = array<i64: 16, 128>}, {pipeline_mode = #tpu.pipeline_mode<synchronous>, transform_indices = @transform_2, window_bounds = array<i64: 1, 128>}, {transform_indices = @transform_3, window_bounds = array<i64: 8, 128>}]} {
    %c0 = arith.constant 0 : index
    %c0_0 = arith.constant 0 : index
    %0 = vector.load %arg1[%c0, %c0_0] : memref<8x16xf32, #tpu.memory_space<vmem>>, vector<8x16xf32>
    %1 = arith.mulf %0, %0 : vector<8x16xf32>
    %cst = arith.constant dense<0.000000e+00> : vector<8xf32>
    %2 = vector.multi_reduction <add>, %1, %cst [1] : vector<8x16xf32> to vector<8xf32>
    %3 = vector.shape_cast %2 : vector<8xf32> to vector<8x1xf32>
    %cst_1 = arith.constant 1.000000e-24 : f32
    %4 = vector.broadcast %cst_1 : f32 to vector<8x1xf32>
    %5 = arith.maximumf %3, %4 : vector<8x1xf32>
    %6 = math.rsqrt %5 : vector<8x1xf32>
    %cst_2 = arith.constant 1.800000e+00 : f32
    %7 = vector.broadcast %cst_2 : f32 to vector<8x1xf32>
    %8 = arith.mulf %6, %7 : vector<8x1xf32>
    %9 = vector.broadcast %8 : vector<8x1xf32> to vector<8x16xf32>
    %10 = arith.mulf %0, %9 : vector<8x16xf32>
    %c0_3 = arith.constant 0 : index
    %c0_4 = arith.constant 0 : index
    %11 = vector.load %arg2[%c0_3, %c0_4] : memref<16x128xf32, #tpu.memory_space<vmem>>, vector<16x128xf32>
    %cst_5 = arith.constant dense<0.000000e+00> : vector<8x128xf32>
    %12 = tpu.matmul %10, %11, %cst_5 {dimension_numbers = #tpu.dot_dimension_numbers<[1], [0], [0], [1], [0, 0, 1, 1], [], []>} : vector<8x16xf32>, vector<16x128xf32>, vector<8x128xf32> -> vector<8x128xf32>
    %c0_6 = arith.constant 0 : index
    %c0_7 = arith.constant 0 : index
    %13 = vector.load %arg3[%c0_6, %c0_7] : memref<1x128xf32, #tpu.memory_space<vmem>>, vector<1x128xf32>
    %14 = vector.broadcast %13 : vector<1x128xf32> to vector<8x128xf32>
    %15 = arith.addf %12, %14 : vector<8x128xf32>
    %16 = arith.truncf %15 : vector<8x128xf32> to vector<8x128xbf16>
    %c0_8 = arith.constant 0 : index
    %c0_9 = arith.constant 0 : index
    %17 = vector.load %arg4[%c0_8, %c0_9] : memref<8x128xbf16, #tpu.memory_space<vmem>>, vector<8x128xbf16>
    tpu.vector_store %arg4[%c0_8, %c0_9], %16 {strides = array<i32>} : memref<8x128xbf16, #tpu.memory_space<vmem>>, vector<8x128xbf16>,
    return
  }
  func.func @transform_0(%arg0: i32) -> (i32, i32) {
    %c0_i32 = arith.constant 0 : i32
    %c0_i32_0 = arith.constant 0 : i32
    return %arg0, %c0_i32 : i32, i32
  }
  func.func @transform_1(%arg0: i32) -> (i32, i32) {
    %c0_i32 = arith.constant 0 : i32
    %c0_i32_0 = arith.constant 0 : i32
    %c0_i32_1 = arith.constant 0 : i32
    return %c0_i32, %c0_i32_0 : i32, i32
  }
  func.func @transform_2(%arg0: i32) -> (i32, i32) {
    %c0_i32 = arith.constant 0 : i32
    %c0_i32_0 = arith.constant 0 : i32
    %c0_i32_1 = arith.constant 0 : i32
    return %c0_i32, %c0_i32_0 : i32, i32
  }
  func.func @transform_3(%arg0: i32) -> (i32, i32) {
    %c0_i32 = arith.constant 0 : i32
    %c0_i32_0 = arith.constant 0 : i32
    return %arg0, %c0_i32 : i32, i32
  }
}

</mosaic_0001>

<llo_original>
// kernel: tpu_custom_call.1
$region0: #{tpu_custom_call.1}
  #allocation0 [shape = 'u32[]', space=smem, size = 0x4, offset = 0x4, fixed_abs, tag = 'smem constant byte address 0x4 - core index']
  #allocation1 [shape = 'u32[72,128]{1,0:T(1,128)}', space=vmem, size = 0x9000, scoped, tag = 'internal scratch']
  %s0 = inlined_call_operand.hbm [shape: f32[8,16], index: 0, kind: input, shape index: {}]
  %s1 = inlined_call_operand.hbm [shape: f32[16,128], index: 1, kind: input, shape index: {}]
  %s2 = inlined_call_operand.vmem [shape: f32[1,128], index: 2, kind: input, shape index: {}]
  %s3 = inlined_call_operand.hbm [shape: bf16[8,128], index: 3, kind: output, shape index: {}]
  %s4 = sld [smem:[#allocation0]]
  $region30: #{tpu_custom_call.1} parent=0
    _
  %s6 = ssub.s32 1, %s4
  %s7 = scalar_select 0, %s6, %s4
  $region1: #{tpu_custom_call.1} parent=0
    #allocation2 [shape = 'u8[4096]{0}', space=vmem, size = 0x1000, scoped, tag = 'input window, operand 0, single buffered']
    #allocation3 [shape = 's32[1]{0}', space=sflag, size = 0x4, scoped, tag = 'scoped memory for tpu_custom_call.1']
    #allocation4 [shape = 's32[1]{0}', space=sflag, size = 0x4, scoped, tag = 'scoped memory for tpu_custom_call.1']
    #allocation5 [shape = 'u8[8192]{0}', space=vmem, size = 0x2000, scoped, tag = 'input window, operand 1, single buffered']
    #allocation6 [shape = 's32[1]{0}', space=sflag, size = 0x4, scoped, tag = 'scoped memory for tpu_custom_call.1']
    #allocation7 [shape = 'u8[2048]{0}', space=vmem, size = 0x800, scoped, tag = 'output window, operand 0, single buffered']
    %8 = vsyncpa [#allocation3], 0
    %9 = vsyncpa [#allocation6], 0
    %10 = vsyncpa [#allocation4], 0
    // Predicated region
    $region2: #{tpu_custom_call.1} parent=1 // pred_check
      _
    $region3: #{tpu_custom_call.1} parent=1 // pred_check_branch
      %12 = sbr.rel (0) target = $region5
    $region4: #{tpu_custom_call.1} parent=1 // pred_region
      %14 = vsyncadd [#allocation3], 0
      %s16 = sshll.u32 %s0, 4
      %s17 = int_to_ptr.hbm [resolvable:$true] %s16
      %s18 = sshll.u32 [#allocation2], 4
      %s19 = int_to_ptr.vmem [resolvable:$true] %s18
      %21 = dma.hbm_to_vmem [thread:$0]  %s17, 128, %s19, [#allocation3]
    $region5: #{tpu_custom_call.1} parent=1 // pred_fallthru
      _
    // Predicated region
    $region6: #{tpu_custom_call.1} parent=1 // pred_check
      _
    $region7: #{tpu_custom_call.1} parent=1 // pred_check_branch
      %23 = sbr.rel (0) target = $region9
    $region8: #{tpu_custom_call.1} parent=1 // pred_region
      %25 = vsyncadd [#allocation6], 0
      %s26 = sshll.u32 %s1, 4
      %s27 = int_to_ptr.hbm [resolvable:$true] %s26
      %s28 = sshll.u32 [#allocation5], 4
      %s29 = int_to_ptr.vmem [resolvable:$true] %s28
      %34 = dma.hbm_to_vmem [thread:$0]  %s27, 256, %s29, [#allocation6], 128, 128, 8
    $region9: #{tpu_custom_call.1} parent=1 // pred_fallthru
      _
    // Predicated region
    $region10: #{tpu_custom_call.1} parent=1 // pred_check
      _
    $region11: #{tpu_custom_call.1} parent=1 // pred_check_branch
      %36 = sbr.rel (0) target = $region13
    $region12: #{tpu_custom_call.1} parent=1 // pred_region
      _
    $region13: #{tpu_custom_call.1} parent=1 // pred_fallthru
      _
    // Predicated region
    $region14: #{tpu_custom_call.1} parent=1 // pred_check
      _
    $region15: #{tpu_custom_call.1} parent=1 // pred_check_branch
      %38 = sbr.rel (0) target = $region17
    $region16: #{tpu_custom_call.1} parent=1 // pred_region
      %40 = dma.done [#allocation3], 128
    $region17: #{tpu_custom_call.1} parent=1 // pred_fallthru
      _
    // Predicated region
    $region18: #{tpu_custom_call.1} parent=1 // pred_check
      _
    $region19: #{tpu_custom_call.1} parent=1 // pred_check_branch
      %42 = sbr.rel (0) target = $region21
    $region20: #{tpu_custom_call.1} parent=1 // pred_region
      %44 = dma.done [#allocation6], 256
    $region21: #{tpu_custom_call.1} parent=1 // pred_fallthru
      _
    %v45 = vld [vmem:[#allocation2] sm:$0xff]
    %v46 = vmul.f32 %v45, %v45
    %vm47 = vcmask 130048
    %v48 = vsel %vm47, %v46, 0.0
    %49 = vadd.xlane.f32.xlu0 %v48
    %v50 = vpop.xlane.xlu0 %49
    %v51 = vmax.f32 %v50, 1e-24
    %v52 = vrsqrt.pop %v51
    %v53 = vmul.f32 %v52, %v51
    %v54 = vmul.f32 %v53, %v52
    %v55 = vmul.f32 0.5, %v54
    %v56 = vsub.f32 1.5, %v55
    %v57 = vmul.f32 %v52, %v56
    %vm58 = vweird.f32 %v51
    %vm59 = vweird.f32 %v52
    %vm60 = vmor %vm58, %vm59
    %v61 = vsel %vm60, %v52, %v57
    %v62 = vmul.f32 %v61, 1.8
    %v63 = vmul.f32 %v45, %v62
    %v64 = vld [vmem:[#allocation5] sm:$0xff]
    %v65 = vld [vmem:[#allocation5 + $0x8] sm:$0xff]
    %v66 = vld [vmem:[%s2] sm:$0x1]
    %v68 = vperm.slane %v66, 0
    %v71 = vsel %vm47, %v63, 0
    %73 = vmatpush.msra.mxu0 0.0
    %74 = vmatpush.msra.mxu0 0.0
    %75 = vmatpush.msra.mxu0 0.0
    %76 = vmatpush.msra.mxu0 0.0
    %77 = vmatpush.msra.mxu0 0.0
    %78 = vmatpush.msra.mxu0 0.0
    %79 = vmatpush.msra.mxu0 0.0
    %80 = vmatpush.msra.mxu0 0.0
    %81 = vmatpush.msra.mxu0 0.0
    %82 = vmatpush.msra.mxu0 0.0
    %83 = vmatpush.msra.mxu0 0.0
    %84 = vmatpush.msra.mxu0 0.0
    %85 = vmatpush.msra.mxu0 0.0
    %86 = vmatpush.msra.mxu0 0.0
    %87 = vmatpush.msra.mxu0 %v65
    %88 = vmatpush.msra.mxu0 %v64
    %89 = vmatmul.f32.gmra.mxu0 %v71
    %v90 = vpop.f32.mrf.mxu0
    %v91 = vadd.f32 %v68, %v90
    %92 = vdwg.mxu0
    %v93 = vpack.c.bf16 %v91, %v91
    %94 = vst [vmem:[#allocation7] sm:$0xf] %v93
    // Predicated region
    $region22: #{tpu_custom_call.1} parent=1 // pred_check
      _
    $region23: #{tpu_custom_call.1} parent=1 // pred_check_branch
      %96 = sbr.rel (0) target = $region25
    $region24: #{tpu_custom_call.1} parent=1 // pred_region
      %98 = vsyncadd [#allocation4], 0
      %s100 = sshll.u32 [#allocation7], 4
      %s101 = int_to_ptr.vmem [resolvable:$true] %s100
      %s102 = sshll.u32 %s3, 4
      %s103 = int_to_ptr.hbm [resolvable:$true] %s102
      %105 = dma.vmem_to_hbm [thread:$0]  %s101, 64, %s103, [#allocation4]
    $region25: #{tpu_custom_call.1} parent=1 // pred_fallthru
      _
    // Predicated region
    $region26: #{tpu_custom_call.1} parent=1 // pred_check
      _
    $region27: #{tpu_custom_call.1} parent=1 // pred_check_branch
      %107 = sbr.rel (0) target = $region29
    $region28: #{tpu_custom_call.1} parent=1 // pred_region
      %109 = dma.done [#allocation4], 64
    $region29: #{tpu_custom_call.1} parent=1 // pred_fallthru
      _
    %110 = vsyncpa [#allocation3], 1
    %111 = vsyncpa [#allocation6], 1
    %112 = vsyncpa [#allocation4], 1

</llo_original>
